<compile_context>
chip_gen: v7x
topology: tpu7x:2x2x1
jax: 0.10.0
libtpu: 0.0.40
codegen_flags: <defaults>
</compile_context>

<pallas_src>
import functools

import jax
import jax.numpy as jnp
from jax.experimental import pallas as pl
from jax.experimental.pallas import tpu as pltpu

INPUT_DIM = 86
HIDDEN_DIM = 128
OUTPUT_DIM = 86


def _round_up(n, m):
    return ((n + m - 1) // m) * m


def _mlp_kernel(x_ref, w1_ref, b1_ref, w2_ref, b2_ref, w3_ref, b3_ref, o_ref):
    """One TM-row tile through the 3-layer MLP (bf16 matmuls, f32 accumulate)."""
    x = x_ref[...].astype(jnp.bfloat16)                           # (TM, 86)

    h1 = jnp.dot(x, w1_ref[...], preferred_element_type=jnp.float32)
    h1 = jnp.maximum(h1 + b1_ref[...], 0.0)                       # (TM, 128) f32

    h2 = jnp.dot(h1.astype(jnp.bfloat16), w2_ref[...],
                 preferred_element_type=jnp.float32)
    h2 = jnp.maximum(h2 + b2_ref[...], 0.0)                       # (TM, 128) f32

    out = jnp.dot(h2.astype(jnp.bfloat16), w3_ref[...],
                  preferred_element_type=jnp.float32)
    out = out + b3_ref[...]                                       # (TM, 86) f32

    o_ref[...] = out.astype(o_ref.dtype)


@functools.partial(jax.jit, static_argnames=("tm",))
def gaussian_refinement_mlp(x, params, *, tm=2048):
    """x: (B, G, INPUT_DIM) float32. Returns (B, G, OUTPUT_DIM) float32."""
    w1, b1, w2, b2, w3, b3 = params
    B, G, F = x.shape
    assert F == INPUT_DIM
    N = B * G
    x2d = x.reshape(N, F)

    # Adaptive row tile:
    #  - never (much) larger than N,
    #  - and at most ceil(N/2) rounded up to 8, so the grid has >= 2 steps
    #    whenever N > 8 (both v7x TensorCores get work via "parallel").
    half = max(8, _round_up(-(-N // 2), 8))
    tm_eff = min(tm, half)
    grid = (pl.cdiv(N, tm_eff),)

    # Weights -> bf16 once (tiny, resident in VMEM across all grid steps).
    w1b = w1.astype(jnp.bfloat16)                                  # (86, 128)
    w2b = w2.astype(jnp.bfloat16)                                  # (128, 128)
    w3b = w3.astype(jnp.bfloat16)                                  # (128, 86)

    # Biases stay f32, shaped (1, dim) for 2D VMEM tiles.
    b1r = b1.reshape(1, HIDDEN_DIM).astype(jnp.float32)
    b2r = b2.reshape(1, HIDDEN_DIM).astype(jnp.float32)
    b3r = b3.reshape(1, OUTPUT_DIM).astype(jnp.float32)

    out2d = pl.pallas_call(
        _mlp_kernel,
        out_shape=jax.ShapeDtypeStruct((N, OUTPUT_DIM), x.dtype),
        grid_spec=pltpu.PrefetchScalarGridSpec(
            num_scalar_prefetch=0,
            grid=grid,
            in_specs=[
                pl.BlockSpec((tm_eff, INPUT_DIM), lambda i: (i, 0)),        # x tile
                pl.BlockSpec((INPUT_DIM, HIDDEN_DIM), lambda i: (0, 0)),    # w1
                pl.BlockSpec((1, HIDDEN_DIM), lambda i: (0, 0)),            # b1
                pl.BlockSpec((HIDDEN_DIM, HIDDEN_DIM), lambda i: (0, 0)),   # w2
                pl.BlockSpec((1, HIDDEN_DIM), lambda i: (0, 0)),            # b2
                pl.BlockSpec((HIDDEN_DIM, OUTPUT_DIM), lambda i: (0, 0)),   # w3
                pl.BlockSpec((1, OUTPUT_DIM), lambda i: (0, 0)),            # b3
            ],
            out_specs=pl.BlockSpec((tm_eff, OUTPUT_DIM), lambda i: (i, 0)),  # 86-wide out
        ),
        compiler_params=pltpu.CompilerParams(
            dimension_semantics=("parallel",),
            vmem_limit_bytes=32 * 1024 * 1024,
        ),
    )(x2d, w1b, b1r, w2b, b2r, w3b, b3r)

    return out2d.reshape(B, G, OUTPUT_DIM)


def init_params(key):
    """Deterministic init matching nn.Linear shapes (stored transposed: (in, out))."""
    ks = jax.random.split(key, 6)

    def linear(kw, kb, fan_in, fan_out):
        bound = 1.0 / jnp.sqrt(fan_in)
        w = jax.random.uniform(kw, (fan_in, fan_out), jnp.float32, -bound, bound)
        b = jax.random.uniform(kb, (fan_out,), jnp.float32, -bound, bound)
        return w, b

    w1, b1 = linear(ks[0], ks[1], INPUT_DIM, HIDDEN_DIM)
    w2, b2 = linear(ks[2], ks[3], HIDDEN_DIM, HIDDEN_DIM)
    w3, b3 = linear(ks[4], ks[5], HIDDEN_DIM, OUTPUT_DIM)
    return (w1, b1, w2, b2, w3, b3)


def reference_mlp(x, params):
    """Pure-JAX f32 reference (matches the PyTorch module's forward)."""
    w1, b1, w2, b2, w3, b3 = params
    h = jnp.maximum(x @ w1 + b1, 0.0)
    h = jnp.maximum(h @ w2 + b2, 0.0)
    return h @ w3 + b3


if __name__ == "__main__":
    key = jax.random.PRNGKey(0)
    k_x, k_p = jax.random.split(key)

    B, G = 2, 8  # batch of 2, 8 gaussians each
    x = jax.random.normal(k_x, (B, G, INPUT_DIM), jnp.float32)
    params = init_params(k_p)

    out = gaussian_refinement_mlp(x, params)
    out = jax.block_until_ready(out)

    ref = reference_mlp(x, params)
    assert out.shape == (B, G, OUTPUT_DIM)
    max_err = float(jnp.max(jnp.abs(out - ref)))
    # bf16 matmul inputs -> looser tolerance vs the f32 reference.
    assert jnp.allclose(out, ref, atol=5e-2, rtol=5e-2), (
        f"mismatch vs reference (max|diff|={max_err})")

    print("KERNEL_OK")
</pallas_src>

<mosaic_0001>
module attributes {stable_mosaic.version = 11 : i64} {
  func.func @_mlp_kernel(%arg0: i32, %arg1: memref<8x86xf32, #tpu.memory_space<vmem>>, %arg2: memref<86x128xbf16, #tpu.memory_space<vmem>>, %arg3: memref<1x128xf32, #tpu.memory_space<vmem>>, %arg4: memref<128x128xbf16, #tpu.memory_space<vmem>>, %arg5: memref<1x128xf32, #tpu.memory_space<vmem>>, %arg6: memref<128x86xbf16, #tpu.memory_space<vmem>>, %arg7: memref<1x86xf32, #tpu.memory_space<vmem>>, %arg8: memref<8x86xf32, #tpu.memory_space<vmem>>) attributes {dimension_semantics = [#tpu.dimension_semantics<parallel>], iteration_bounds = array<i64: 2>, scalar_prefetch = 0 : i64, scratch_operands = 0 : i64, tpu.core_type = #tpu.core_type<tc>, window_params = [{transform_indices = @transform_0, window_bounds = array<i64: 8, 86>}, {pipeline_mode = #tpu.pipeline_mode<synchronous>, transform_indices = @transform_1, window_bounds = array<i64: 86, 128>}, {pipeline_mode = #tpu.pipeline_mode<synchronous>, transform_indices = @transform_2, window_bounds = array<i64: 1, 128>}, {pipeline_mode = #tpu.pipeline_mode<synchronous>, transform_indices = @transform_3, window_bounds = array<i64: 128, 128>}, {pipeline_mode = #tpu.pipeline_mode<synchronous>, transform_indices = @transform_4, window_bounds = array<i64: 1, 128>}, {pipeline_mode = #tpu.pipeline_mode<synchronous>, transform_indices = @transform_5, window_bounds = array<i64: 128, 86>}, {pipeline_mode = #tpu.pipeline_mode<synchronous>, transform_indices = @transform_6, window_bounds = array<i64: 1, 86>}, {transform_indices = @transform_7, window_bounds = array<i64: 8, 86>}]} {
    %c0 = arith.constant 0 : index
    %c0_0 = arith.constant 0 : index
    %0 = vector.load %arg1[%c0, %c0_0] : memref<8x86xf32, #tpu.memory_space<vmem>>, vector<8x86xf32>
    %1 = arith.truncf %0 : vector<8x86xf32> to vector<8x86xbf16>
    %c0_1 = arith.constant 0 : index
    %c0_2 = arith.constant 0 : index
    %2 = vector.load %arg2[%c0_1, %c0_2] : memref<86x128xbf16, #tpu.memory_space<vmem>>, vector<86x128xbf16>
    %cst = arith.constant dense<0.000000e+00> : vector<8x128xf32>
    %3 = tpu.matmul %1, %2, %cst {dimension_numbers = #tpu.dot_dimension_numbers<[1], [0], [0], [1], [0, 0, 1, 1], [], []>} : vector<8x86xbf16>, vector<86x128xbf16>, vector<8x128xf32> -> vector<8x128xf32>
    %c0_3 = arith.constant 0 : index
    %c0_4 = arith.constant 0 : index
    %4 = vector.load %arg3[%c0_3, %c0_4] : memref<1x128xf32, #tpu.memory_space<vmem>>, vector<1x128xf32>
    %5 = vector.broadcast %4 : vector<1x128xf32> to vector<8x128xf32>
    %6 = arith.addf %3, %5 : vector<8x128xf32>
    %cst_5 = arith.constant 0.000000e+00 : f32
    %7 = vector.broadcast %cst_5 : f32 to vector<8x128xf32>
    %8 = arith.maximumf %6, %7 : vector<8x128xf32>
    %9 = arith.truncf %8 : vector<8x128xf32> to vector<8x128xbf16>
    %c0_6 = arith.constant 0 : index
    %c0_7 = arith.constant 0 : index
    %10 = vector.load %arg4[%c0_6, %c0_7] : memref<128x128xbf16, #tpu.memory_space<vmem>>, vector<128x128xbf16>
    %cst_8 = arith.constant dense<0.000000e+00> : vector<8x128xf32>
    %11 = tpu.matmul %9, %10, %cst_8 {dimension_numbers = #tpu.dot_dimension_numbers<[1], [0], [0], [1], [0, 0, 1, 1], [], []>} : vector<8x128xbf16>, vector<128x128xbf16>, vector<8x128xf32> -> vector<8x128xf32>
    %c0_9 = arith.constant 0 : index
    %c0_10 = arith.constant 0 : index
    %12 = vector.load %arg5[%c0_9, %c0_10] : memref<1x128xf32, #tpu.memory_space<vmem>>, vector<1x128xf32>
    %13 = vector.broadcast %12 : vector<1x128xf32> to vector<8x128xf32>
    %14 = arith.addf %11, %13 : vector<8x128xf32>
    %cst_11 = arith.constant 0.000000e+00 : f32
    %15 = vector.broadcast %cst_11 : f32 to vector<8x128xf32>
    %16 = arith.maximumf %14, %15 : vector<8x128xf32>
    %17 = arith.truncf %16 : vector<8x128xf32> to vector<8x128xbf16>
    %c0_12 = arith.constant 0 : index
    %c0_13 = arith.constant 0 : index
    %18 = vector.load %arg6[%c0_12, %c0_13] : memref<128x86xbf16, #tpu.memory_space<vmem>>, vector<128x86xbf16>
    %cst_14 = arith.constant dense<0.000000e+00> : vector<8x86xf32>
    %19 = tpu.matmul %17, %18, %cst_14 {dimension_numbers = #tpu.dot_dimension_numbers<[1], [0], [0], [1], [0, 0, 1, 1], [], []>} : vector<8x128xbf16>, vector<128x86xbf16>, vector<8x86xf32> -> vector<8x86xf32>
    %c0_15 = arith.constant 0 : index
    %c0_16 = arith.constant 0 : index
    %20 = vector.load %arg7[%c0_15, %c0_16] : memref<1x86xf32, #tpu.memory_space<vmem>>, vector<1x86xf32>
    %21 = vector.broadcast %20 : vector<1x86xf32> to vector<8x86xf32>
    %22 = arith.addf %19, %21 : vector<8x86xf32>
    %c0_17 = arith.constant 0 : index
    %c0_18 = arith.constant 0 : index
    %23 = vector.load %arg8[%c0_17, %c0_18] : memref<8x86xf32, #tpu.memory_space<vmem>>, vector<8x86xf32>
    tpu.vector_store %arg8[%c0_17, %c0_18], %22 {strides = array<i32>} : memref<8x86xf32, #tpu.memory_space<vmem>>, vector<8x86xf32>,
    return
  }
  func.func @transform_0(%arg0: i32) -> (i32, i32) {
    %c0_i32 = arith.constant 0 : i32
    %c0_i32_0 = arith.constant 0 : i32
    return %arg0, %c0_i32 : i32, i32
  }
  func.func @transform_1(%arg0: i32) -> (i32, i32) {
    %c0_i32 = arith.constant 0 : i32
    %c0_i32_0 = arith.constant 0 : i32
    %c0_i32_1 = arith.constant 0 : i32
    return %c0_i32, %c0_i32_0 : i32, i32
  }
  func.func @transform_2(%arg0: i32) -> (i32, i32) {
    %c0_i32 = arith.constant 0 : i32
    %c0_i32_0 = arith.constant 0 : i32
    %c0_i32_1 = arith.constant 0 : i32
    return %c0_i32, %c0_i32_0 : i32, i32
  }
  func.func @transform_3(%arg0: i32) -> (i32, i32) {
    %c0_i32 = arith.constant 0 : i32
    %c0_i32_0 = arith.constant 0 : i32
    %c0_i32_1 = arith.constant 0 : i32
    return %c0_i32, %c0_i32_0 : i32, i32
  }
  func.func @transform_4(%arg0: i32) -> (i32, i32) {
    %c0_i32 = arith.constant 0 : i32
    %c0_i32_0 = arith.constant 0 : i32
    %c0_i32_1 = arith.constant 0 : i32
    return %c0_i32, %c0_i32_0 : i32, i32
  }
  func.func @transform_5(%arg0: i32) -> (i32, i32) {
    %c0_i32 = arith.constant 0 : i32
    %c0_i32_0 = arith.constant 0 : i32
    %c0_i32_1 = arith.constant 0 : i32
    return %c0_i32, %c0_i32_0 : i32, i32
  }
  func.func @transform_6(%arg0: i32) -> (i32, i32) {
    %c0_i32 = arith.constant 0 : i32
    %c0_i32_0 = arith.constant 0 : i32
    %c0_i32_1 = arith.constant 0 : i32
    return %c0_i32, %c0_i32_0 : i32, i32
  }
  func.func @transform_7(%arg0: i32) -> (i32, i32) {
    %c0_i32 = arith.constant 0 : i32
    %c0_i32_0 = arith.constant 0 : i32
    return %arg0, %c0_i32 : i32, i32
  }
}

</mosaic_0001>

<llo_original>
// kernel: gaussian_refinement_mlp.1
$region0: #{gaussian_refinement_mlp.1}
  #allocation0 [shape = 'u32[]', space=smem, size = 0x4, offset = 0x4, fixed_abs, tag = 'smem constant byte address 0x4 - core index']
  #allocation1 [shape = 'u32[144,128]{1,0:T(1,128)}', space=vmem, size = 0x12000, scoped, tag = 'internal scratch']
  %s0 = inlined_call_operand.vmem [shape: f32[16,86], index: 0, kind: input, shape index: {}]
  %s1 = inlined_call_operand.vmem [shape: bf16[86,128], index: 1, kind: input, shape index: {}]
  %s2 = inlined_call_operand.vmem [shape: f32[1,128], index: 2, kind: input, shape index: {}]
  %s3 = inlined_call_operand.vmem [shape: bf16[128,128], index: 3, kind: input, shape index: {}]
  %s4 = inlined_call_operand.vmem [shape: f32[1,128], index: 4, kind: input, shape index: {}]
  %s5 = inlined_call_operand.vmem [shape: bf16[128,86], index: 5, kind: input, shape index: {}]
  %s6 = inlined_call_operand.vmem [shape: f32[1,86], index: 6, kind: input, shape index: {}]
  %s7 = inlined_call_operand.hbm [shape: f32[16,86], index: 7, kind: output, shape index: {}]
  %s8 = sld [smem:[#allocation0]]
  $region61: #{gaussian_refinement_mlp.1} parent=0
    _
  %s10 = ssub.s32 1, %s8
  %s11 = scalar_select 0, %s10, %s8
  $region1: #{gaussian_refinement_mlp.1} parent=0
    #allocation2 [shape = 'u8[8192]{0}', space=vmem, size = 0x2000, scoped, tag = 'output window, operand 0']
    #allocation3 [shape = 's32[2]{0}', space=sflag, size = 0x8, scoped, tag = 'scoped memory for gaussian_refinement_mlp.1']
    %12 = vsyncpa [#allocation3], 0
    %s13 = scalar_lea.sflag [#allocation3], 1
    %14 = vsyncpa %s13, 0
    loop: start=0, step=1, limit=4
    $region2: #{gaussian_refinement_mlp.1} parent=1 // loop_pre_header
      _
    $region3: #{gaussian_refinement_mlp.1} parent=1 // loop_header
      %s16 = sphi 0, %s20
      %p17 = scmp.ge.s32.totalorder %s16, 4
      %s26 = sphi 0, %s28
      %s29 = sphi 0, %s26
      %s30 = sphi 0, %s29
      %s46 = sphi 0, %s30
      %s50 = sphi 0, %s50
      %s52 = sphi 0, %s50
      %s53 = sphi 0, %s52
      %s67 = sphi 0, %s53
      %s71 = sphi 0, %s71
      %s73 = sphi 0, %s71
      %s74 = sphi 0, %s73
      %s88 = sphi 0, %s74
      %s92 = sphi 0, %s92
      %s94 = sphi 0, %s92
      %s95 = sphi 0, %s94
      %s109 = sphi 0, %s95
      %s113 = sphi 0, %s113
      %s115 = sphi 0, %s113
      %s116 = sphi 0, %s115
      %s130 = sphi 0, %s116
      %s134 = sphi 0, %s134
      %s136 = sphi 0, %s134
      %s137 = sphi 0, %s136
      %s151 = sphi 0, %s137
      %s155 = sphi 0, %s155
      %s157 = sphi 0, %s155
      %s158 = sphi 0, %s157
      %s172 = sphi 0, %s158
      %s178 = sphi 0, %s180
      %s181 = sphi 0, %s178
      %s182 = sphi 0, %s181
      %s198 = sphi 0, %s182
    $region4: #{gaussian_refinement_mlp.1} parent=1 // loop_header_branch
      %19 = sbr.rel (%p17) target = $region8
    $region5: #{gaussian_refinement_mlp.1} parent=1 // loop_body
      %s21 = ssub.s32 %s16, 1
      %s22 = ssub.s32 %s16, 2
      %s23 = sadd.s32 %s16, 1
      %s24 = ssub.s32 %s16, %s23
      %p25 = scmp.eq.s32.totalorder %s24, 0
      %s27 = sadd.s32 %s26, 1
      %s28 = scalar_select %p25, %s26, %s27
      %p31 = pneg %p25
      %p32 = scmp.eq.s32.totalorder %s16, 1
      %p33 = por %p31, %p32
      %p34 = scmp.ne.s32.totalorder %s26, %s29
      %p35 = scmp.eq.s32.totalorder %s16, 0
      %p36 = por %p34, %p35
      %p37 = scmp.ne.s32.totalorder %s26, %s29
      %p38 = scmp.eq.s32.totalorder %s21, 1
      %p39 = por %p37, %p38
      %p40 = scmp.ne.s32.totalorder %s29, %s30
      %p41 = scmp.eq.s32.totalorder %s21, 0
      %p42 = por %p40, %p41
      %p43 = scmp.ne.s32.totalorder %s29, %s30
      %p44 = scmp.eq.s32.totalorder %s22, 1
      %p45 = por %p43, %p44
      %p47 = scmp.ne.s32.totalorder %s30, %s46
      %p48 = scmp.eq.s32.totalorder %s22, 0
      %p49 = por %p47, %p48
      %s51 = sadd.s32 %s50, 1
      %p54 = scmp.eq.s32.totalorder %s16, 1
      %p55 = scmp.ne.s32.totalorder %s50, %s52
      %p56 = scmp.eq.s32.totalorder %s16, 0
      %p57 = por %p55, %p56
      %p58 = scmp.ne.s32.totalorder %s50, %s52
      %p59 = scmp.eq.s32.totalorder %s21, 1
      %p60 = por %p58, %p59
      %p61 = scmp.ne.s32.totalorder %s52, %s53
      %p62 = scmp.eq.s32.totalorder %s21, 0
      %p63 = por %p61, %p62
      %p64 = scmp.ne.s32.totalorder %s52, %s53
      %p65 = scmp.eq.s32.totalorder %s22, 1
      %p66 = por %p64, %p65
      %p68 = scmp.ne.s32.totalorder %s53, %s67
      %p69 = scmp.eq.s32.totalorder %s22, 0
      %p70 = por %p68, %p69
      %s72 = sadd.s32 %s71, 1
      %p75 = scmp.eq.s32.totalorder %s16, 1
      %p76 = scmp.ne.s32.totalorder %s71, %s73
      %p77 = scmp.eq.s32.totalorder %s16, 0
      %p78 = por %p76, %p77
      %p79 = scmp.ne.s32.totalorder %s71, %s73
      %p80 = scmp.eq.s32.totalorder %s21, 1
      %p81 = por %p79, %p80
      %p82 = scmp.ne.s32.totalorder %s73, %s74
      %p83 = scmp.eq.s32.totalorder %s21, 0
      %p84 = por %p82, %p83
      %p85 = scmp.ne.s32.totalorder %s73, %s74
      %p86 = scmp.eq.s32.totalorder %s22, 1
      %p87 = por %p85, %p86
      %p89 = scmp.ne.s32.totalorder %s74, %s88
      %p90 = scmp.eq.s32.totalorder %s22, 0
      %p91 = por %p89, %p90
      %s93 = sadd.s32 %s92, 1
      %p96 = scmp.eq.s32.totalorder %s16, 1
      %p97 = scmp.ne.s32.totalorder %s92, %s94
      %p98 = scmp.eq.s32.totalorder %s16, 0
      %p99 = por %p97, %p98
      %p100 = scmp.ne.s32.totalorder %s92, %s94
      %p101 = scmp.eq.s32.totalorder %s21, 1
      %p102 = por %p100, %p101
      %p103 = scmp.ne.s32.totalorder %s94, %s95
      %p104 = scmp.eq.s32.totalorder %s21, 0
      %p105 = por %p103, %p104
      %p106 = scmp.ne.s32.totalorder %s94, %s95
      %p107 = scmp.eq.s32.totalorder %s22, 1
      %p108 = por %p106, %p107
      %p110 = scmp.ne.s32.totalorder %s95, %s109
      %p111 = scmp.eq.s32.totalorder %s22, 0
      %p112 = por %p110, %p111
      %s114 = sadd.s32 %s113, 1
      %p117 = scmp.eq.s32.totalorder %s16, 1
      %p118 = scmp.ne.s32.totalorder %s113, %s115
      %p119 = scmp.eq.s32.totalorder %s16, 0
      %p120 = por %p118, %p119
      %p121 = scmp.ne.s32.totalorder %s113, %s115
      %p122 = scmp.eq.s32.totalorder %s21, 1
      %p123 = por %p121, %p122
      %p124 = scmp.ne.s32.totalorder %s115, %s116
      %p125 = scmp.eq.s32.totalorder %s21, 0
      %p126 = por %p124, %p125
      %p127 = scmp.ne.s32.totalorder %s115, %s116
      %p128 = scmp.eq.s32.totalorder %s22, 1
      %p129 = por %p127, %p128
      %p131 = scmp.ne.s32.totalorder %s116, %s130
      %p132 = scmp.eq.s32.totalorder %s22, 0
      %p133 = por %p131, %p132
      %s135 = sadd.s32 %s134, 1
      %p138 = scmp.eq.s32.totalorder %s16, 1
      %p139 = scmp.ne.s32.totalorder %s134, %s136
      %p140 = scmp.eq.s32.totalorder %s16, 0
      %p141 = por %p139, %p140
      %p142 = scmp.ne.s32.totalorder %s134, %s136
      %p143 = scmp.eq.s32.totalorder %s21, 1
      %p144 = por %p142, %p143
      %p145 = scmp.ne.s32.totalorder %s136, %s137
      %p146 = scmp.eq.s32.totalorder %s21, 0
      %p147 = por %p145, %p146
      %p148 = scmp.ne.s32.totalorder %s136, %s137
      %p149 = scmp.eq.s32.totalorder %s22, 1
      %p150 = por %p148, %p149
      %p152 = scmp.ne.s32.totalorder %s137, %s151
      %p153 = scmp.eq.s32.totalorder %s22, 0
      %p154 = por %p152, %p153
      %s156 = sadd.s32 %s155, 1
      %p159 = scmp.eq.s32.totalorder %s16, 1
      %p160 = scmp.ne.s32.totalorder %s155, %s157
      %p161 = scmp.eq.s32.totalorder %s16, 0
      %p162 = por %p160, %p161
      %p163 = scmp.ne.s32.totalorder %s155, %s157
      %p164 = scmp.eq.s32.totalorder %s21, 1
      %p165 = por %p163, %p164
      %p166 = scmp.ne.s32.totalorder %s157, %s158
      %p167 = scmp.eq.s32.totalorder %s21, 0
      %p168 = por %p166, %p167
      %p169 = scmp.ne.s32.totalorder %s157, %s158
      %p170 = scmp.eq.s32.totalorder %s22, 1
      %p171 = por %p169, %p170
      %p173 = scmp.ne.s32.totalorder %s158, %s172
      %p174 = scmp.eq.s32.totalorder %s22, 0
      %p175 = por %p173, %p174
      %s176 = ssub.s32 %s16, %s23
      %p177 = scmp.eq.s32.totalorder %s176, 0
      %s179 = sadd.s32 %s178, 1
      %s180 = scalar_select %p177, %s178, %s179
      %p183 = pneg %p177
      %p184 = scmp.eq.s32.totalorder %s16, 1
      %p185 = por %p183, %p184
      %p186 = scmp.ne.s32.totalorder %s178, %s181
      %p187 = scmp.eq.s32.totalorder %s16, 0
      %p188 = por %p186, %p187
      %p189 = scmp.ne.s32.totalorder %s178, %s181
      %p190 = scmp.eq.s32.totalorder %s21, 1
      %p191 = por %p189, %p190
      %p192 = scmp.ne.s32.totalorder %s181, %s182
      %p193 = scmp.eq.s32.totalorder %s21, 0
      %p194 = por %p192, %p193
      %p195 = scmp.ne.s32.totalorder %s181, %s182
      %p196 = scmp.eq.s32.totalorder %s22, 1
      %p197 = por %p195, %p196
      %p199 = scmp.ne.s32.totalorder %s182, %s198
      %p200 = scmp.eq.s32.totalorder %s22, 0
      %p201 = por %p199, %p200
      %p202 = scmp.le.s32.totalorder 1, %s16
      %p203 = scmp.lt.s32.totalorder %s16, 3
      %p204 = pnand %p202, %p203
      %p205 = pneg %p204
      // Predicated region
      $region9: #{gaussian_refinement_mlp.1} parent=5 // pred_check
        _
      $region10: #{gaussian_refinement_mlp.1} parent=5 // pred_check_branch
        %207 = sbr.rel (%p204) target = $region12
      $region11: #{gaussian_refinement_mlp.1} parent=5 // pred_region
        %s208 = ssub.s32 %s16, 1
        // Predicated region
        $region13: #{gaussian_refinement_mlp.1} parent=11 // pred_check
          %p209 = pneg %p63
        $region14: #{gaussian_refinement_mlp.1} parent=11 // pred_check_branch
          %211 = sbr.rel (%p209) target = $region16
        $region15: #{gaussian_refinement_mlp.1} parent=11 // pred_region
          _
        $region16: #{gaussian_refinement_mlp.1} parent=11 // pred_fallthru
          _
        // Predicated region
        $region17: #{gaussian_refinement_mlp.1} parent=11 // pred_check
          %p212 = pneg %p84
        $region18: #{gaussian_refinement_mlp.1} parent=11 // pred_check_branch
          %214 = sbr.rel (%p212) target = $region20
        $region19: #{gaussian_refinement_mlp.1} parent=11 // pred_region
          _
        $region20: #{gaussian_refinement_mlp.1} parent=11 // pred_fallthru
          _
        // Predicated region
        $region21: #{gaussian_refinement_mlp.1} parent=11 // pred_check
          %p215 = pneg %p105
        $region22: #{gaussian_refinement_mlp.1} parent=11 // pred_check_branch
          %217 = sbr.rel (%p215) target = $region24
        $region23: #{gaussian_refinement_mlp.1} parent=11 // pred_region
          _
        $region24: #{gaussian_refinement_mlp.1} parent=11 // pred_fallthru
          _
        // Predicated region
        $region25: #{gaussian_refinement_mlp.1} parent=11 // pred_check
          %p218 = pneg %p126
        $region26: #{gaussian_refinement_mlp.1} parent=11 // pred_check_branch
          %220 = sbr.rel (%p218) target = $region28
        $region27: #{gaussian_refinement_mlp.1} parent=11 // pred_region
          _
        $region28: #{gaussian_refinement_mlp.1} parent=11 // pred_fallthru
          _
        // Predicated region
        $region29: #{gaussian_refinement_mlp.1} parent=11 // pred_check
          %p221 = pneg %p147
        $region30: #{gaussian_refinement_mlp.1} parent=11 // pred_check_branch
          %223 = sbr.rel (%p221) target = $region32
        $region31: #{gaussian_refinement_mlp.1} parent=11 // pred_region
          _
        $region32: #{gaussian_refinement_mlp.1} parent=11 // pred_fallthru
          _
        // Predicated region
        $region33: #{gaussian_refinement_mlp.1} parent=11 // pred_check
          %p224 = pneg %p168
        $region34: #{gaussian_refinement_mlp.1} parent=11 // pred_check_branch
          %226 = sbr.rel (%p224) target = $region36
        $region35: #{gaussian_refinement_mlp.1} parent=11 // pred_region
          _
        $region36: #{gaussian_refinement_mlp.1} parent=11 // pred_fallthru
          _
      $region12: #{gaussian_refinement_mlp.1} parent=5 // pred_fallthru
        _
      %p227 = scmp.lt.s32.totalorder %s16, 2
      // Predicated region
      $region37: #{gaussian_refinement_mlp.1} parent=5 // pred_check
        %p228 = pneg %p227
      $region38: #{gaussian_refinement_mlp.1} parent=5 // pred_check_branch
        %230 = sbr.rel (%p228) target = $region40
      $region39: #{gaussian_refinement_mlp.1} parent=5 // pred_region
        // Predicated region
        $region41: #{gaussian_refinement_mlp.1} parent=39 // pred_check
          %p231 = pneg %p36
        $region42: #{gaussian_refinement_mlp.1} parent=39 // pred_check_branch
          %233 = sbr.rel (%p231) target = $region44
        $region43: #{gaussian_refinement_mlp.1} parent=39 // pred_region
          %p234 = scmp.lt.s32.totalorder %s16, 1
          %s235 = scalar_select %p234, %s16, 1
          %s236 = smul.addr %s235, 8
          %s237 = scalar_lea.vmem %s0, %s236
        $region44: #{gaussian_refinement_mlp.1} parent=39 // pred_fallthru
          _
      $region40: #{gaussian_refinement_mlp.1} parent=5 // pred_fallthru
        _
      %p238 = scmp.le.s32.totalorder 1, %s16
      %p239 = scmp.lt.s32.totalorder %s16, 3
      %p240 = pnand %p238, %p239
      %p241 = pneg %p240
      // Predicated region
      $region45: #{gaussian_refinement_mlp.1} parent=5 // pred_check
        _
      $region46: #{gaussian_refinement_mlp.1} parent=5 // pred_check_branch
        %243 = sbr.rel (%p240) target = $region48
      $region47: #{gaussian_refinement_mlp.1} parent=5 // pred_region
        %s244 = ssub.s32 %s16, 1
        %p245 = scmp.lt.s32.totalorder %s21, 1
        %s246 = scalar_select %p245, %s21, 1
        %s247 = smul.addr %s246, 8
        %s248 = scalar_lea.vmem %s0, %s247
        %p249 = pneg %p42
        %p250 = pneg %p39
        %p251 = pneg %p63
        %p252 = pneg %p60
        %p253 = pneg %p84
        %p254 = pneg %p81
        %p255 = pneg %p105
        %p256 = pneg %p102
        %p257 = pneg %p126
        %p258 = pneg %p123
        %p259 = pneg %p147
        %p260 = pneg %p144
        %p261 = pneg %p168
        %p262 = pneg %p165
        %p263 = pneg %p194
        %p264 = pneg %p191
        %s265 = sand.u32 %s181, 1
        %s266 = scalar_lea.sflag [#allocation3], %s265
        %s267 = sand.u32 %s181, 1
        %s268 = smul.addr %s267, 8
        %s269 = scalar_lea.vmem [#allocation2], %s268
        %p270 = scmp.lt.s32.totalorder %s21, 1
        %s271 = scalar_select %p270, %s21, 1
        %s272 = smul.addr %s271, 8
        %s273 = scalar_lea.vmem %s0, %s272
        %v275 = vld [vmem:[%s273] sm:$0xff]
        %v276 = vpack.c.bf16 %v275, %v275
        %v277 = vld [vmem:[%s1] sm:$0xf]
        %v278 = vld [vmem:[%s1 + $0x4] sm:$0xf]
        %v279 = vld [vmem:[%s1 + $0x8] sm:$0xf]
        %v280 = vld [vmem:[%s1 + $0xc] sm:$0xf]
        %v281 = vld [vmem:[%s1 + $0x10] sm:$0xf]
        %v282 = vld [vmem:[%s1 + $0x14] sm:$0xf]
        %v283 = vld [vmem:[%s1 + $0x18] sm:$0xf]
        %v284 = vld [vmem:[%s1 + $0x1c] sm:$0xf]
        %v285 = vld [vmem:[%s1 + $0x20] sm:$0xf]
        %v286 = vld [vmem:[%s1 + $0x24] sm:$0xf]
        %v287 = vld [vmem:[%s1 + $0x28] sm:$0x7]
        %v288 = vld [vmem:[%s2] sm:$0x1]
        %v290 = vlaneseq
        %v291 = vshrl.u32 %v290, 7
        %v292 = vsub.s32 0, %v291
        %v293 = vrot.slane %v288, %v292
        %v306 = vunpack.c.l.b16 %v277
        %v307 = vunpack.c.l.b16 %v278
        %v308 = vunpack.c.l.b16 %v279
        %v309 = vunpack.c.l.b16 %v280
        %v310 = vunpack.c.l.b16 %v281
        %v311 = vunpack.c.l.b16 %v282
        %v312 = vunpack.c.l.b16 %v283
        %v313 = vunpack.c.l.b16 %v284
        %v314 = vunpack.c.l.b16 %v285
        %v315 = vunpack.c.l.b16 %v286
        %v316 = vunpack.c.l.b16 %v287
        %v317 = vpack.c.b16 %v307, %v306
        %v318 = vpack.c.b16 %v309, %v308
        %v319 = vpack.c.b16 %v311, %v310
        %v320 = vpack.c.b16 %v313, %v312
        %v321 = vpack.c.b16 %v315, %v314
        %v322 = vpack.c.b16 %v316, %v316
        %vm328 = vcmask 703488
        %v330 = vsel %vm328, %v276, 0
        %vm332 = vcmask 1042432
        %v334 = vsel %vm332, %v322, 0
        %336 = vmatprep.subr.bf16.mxu0 0
        %337 = vmatpush1.bf16.msra.mxu0 %v317
        %338 = vmatprep.subr.bf16.mxu0 0
        %339 = vmatpush1.bf16.msra.mxu0 %v318
        %340 = vmatprep.subr.bf16.mxu0 0
        %341 = vmatpush1.bf16.msra.mxu0 %v319
        %342 = vmatprep.subr.bf16.mxu0 0
        %343 = vmatpush1.bf16.msra.mxu0 %v320
        %344 = vmatprep.subr.bf16.mxu0 0
        %345 = vmatpush1.bf16.msra.mxu0 %v321
        %346 = vmatprep.subr.bf16.mxu0 0
        %347 = vmatpush1.bf16.msra.mxu0 %v334
        %348 = vmatprep.subr.bf16.mxu0 0
        %349 = vmatpush1.bf16.msra.mxu0 0
        %350 = vmatprep.subr.bf16.mxu0 0
        %351 = vmatpush1.bf16.msra.mxu0 0
        %352 = vmatprep.subr.bf16.mxu0 0
        %353 = vmatpush1.bf16.msra.mxu0 0
        %354 = vmatprep.subr.bf16.mxu0 0
        %355 = vmatpush1.bf16.msra.mxu0 0
        %356 = vmatprep.subr.bf16.mxu0 0
        %357 = vmatpush1.bf16.msra.mxu0 0
        %358 = vmatprep.subr.bf16.mxu0 0
        %359 = vmatpush1.bf16.msra.mxu0 0
        %360 = vmatprep.subr.bf16.mxu0 0
        %361 = vmatpush1.bf16.msra.mxu0 0
        %362 = vmatprep.subr.bf16.mxu0 0
        %363 = vmatpush1.bf16.msra.mxu0 0
        %364 = vmatprep.subr.bf16.mxu0 0
        %365 = vmatpush1.bf16.msra.mxu0 0
        %366 = vmatprep.subr.bf16.mxu0 0
        %367 = vmatpush1.bf16.msra.mxu0 0
        %368 = vmatprep.mubr.bf16.mxu0 0
        %369 = vmatmul.mubr.bf16.gmra.mrb[0].mxu0 %v330
        %v370 = vpop.f32.mrb[0].mxu0
        %v371 = vadd.f32 %v293, %v370
        %v372 = vpop.f32.mrb[0].mxu0
        %v373 = vpop.f32.mrb[0].mxu0
        %v374 = vpop.f32.mrb[0].mxu0
        %375 = vdwg.mxu0
        %v376 = vmax.f32 %v371, 0.0
        %v377 = vpack.c.bf16 %v376, %v376
        %v378 = vld [vmem:[%s3] sm:$0xf]
        %v379 = vld [vmem:[%s3 + $0x4] sm:$0xf]
        %v380 = vld [vmem:[%s3 + $0x8] sm:$0xf]
        %v381 = vld [vmem:[%s3 + $0xc] sm:$0xf]
        %v382 = vld [vmem:[%s3 + $0x10] sm:$0xf]
        %v383 = vld [vmem:[%s3 + $0x14] sm:$0xf]
        %v384 = vld [vmem:[%s3 + $0x18] sm:$0xf]
        %v385 = vld [vmem:[%s3 + $0x1c] sm:$0xf]
        %v386 = vld [vmem:[%s3 + $0x20] sm:$0xf]
        %v387 = vld [vmem:[%s3 + $0x24] sm:$0xf]
        %v388 = vld [vmem:[%s3 + $0x28] sm:$0xf]
        %v389 = vld [vmem:[%s3 + $0x2c] sm:$0xf]
        %v390 = vld [vmem:[%s3 + $0x30] sm:$0xf]
        %v391 = vld [vmem:[%s3 + $0x34] sm:$0xf]
        %v392 = vld [vmem:[%s3 + $0x38] sm:$0xf]
        %v393 = vld [vmem:[%s3 + $0x3c] sm:$0xf]
        %v394 = vld [vmem:[%s4] sm:$0x1]
        %v396 = vlaneseq
        %v397 = vshrl.u32 %v396, 7
        %v398 = vsub.s32 0, %v397
        %v399 = vrot.slane %v394, %v398
        %v417 = vunpack.c.l.b16 %v378
        %v418 = vunpack.c.l.b16 %v379
        %v419 = vunpack.c.l.b16 %v380
        %v420 = vunpack.c.l.b16 %v381
        %v421 = vunpack.c.l.b16 %v382
        %v422 = vunpack.c.l.b16 %v383
        %v423 = vunpack.c.l.b16 %v384
        %v424 = vunpack.c.l.b16 %v385
        %v425 = vunpack.c.l.b16 %v386
        %v426 = vunpack.c.l.b16 %v387
        %v427 = vunpack.c.l.b16 %v388
        %v428 = vunpack.c.l.b16 %v389
        %v429 = vunpack.c.l.b16 %v390
        %v430 = vunpack.c.l.b16 %v391
        %v431 = vunpack.c.l.b16 %v392
        %v432 = vunpack.c.l.b16 %v393
        %v433 = vpack.c.b16 %v418, %v417
        %v434 = vpack.c.b16 %v420, %v419
        %v435 = vpack.c.b16 %v422, %v421
        %v436 = vpack.c.b16 %v424, %v423
        %v437 = vpack.c.b16 %v426, %v425
        %v438 = vpack.c.b16 %v428, %v427
        %v439 = vpack.c.b16 %v430, %v429
        %v440 = vpack.c.b16 %v432, %v431
        %449 = vmatprep.subr.bf16.mxu0 0
        %450 = vmatpush1.bf16.msra.mxu0 %v433
        %451 = vmatprep.subr.bf16.mxu0 0
        %452 = vmatpush1.bf16.msra.mxu0 %v434
        %453 = vmatprep.subr.bf16.mxu0 0
        %454 = vmatpush1.bf16.msra.mxu0 %v435
        %455 = vmatprep.subr.bf16.mxu0 0
        %456 = vmatpush1.bf16.msra.mxu0 %v436
        %457 = vmatprep.subr.bf16.mxu0 0
        %458 = vmatpush1.bf16.msra.mxu0 %v437
        %459 = vmatprep.subr.bf16.mxu0 0
        %460 = vmatpush1.bf16.msra.mxu0 %v438
        %461 = vmatprep.subr.bf16.mxu0 0
        %462 = vmatpush1.bf16.msra.mxu0 %v439
        %463 = vmatprep.subr.bf16.mxu0 0
        %464 = vmatpush1.bf16.msra.mxu0 %v440
        %465 = vmatprep.subr.bf16.mxu0 0
        %466 = vmatpush1.bf16.msra.mxu0 0
        %467 = vmatprep.subr.bf16.mxu0 0
        %468 = vmatpush1.bf16.msra.mxu0 0
        %469 = vmatprep.subr.bf16.mxu0 0
        %470 = vmatpush1.bf16.msra.mxu0 0
        %471 = vmatprep.subr.bf16.mxu0 0
        %472 = vmatpush1.bf16.msra.mxu0 0
        %473 = vmatprep.subr.bf16.mxu0 0
        %474 = vmatpush1.bf16.msra.mxu0 0
        %475 = vmatprep.subr.bf16.mxu0 0
        %476 = vmatpush1.bf16.msra.mxu0 0
        %477 = vmatprep.subr.bf16.mxu0 0
        %478 = vmatpush1.bf16.msra.mxu0 0
        %479 = vmatprep.subr.bf16.mxu0 0
        %480 = vmatpush1.bf16.msra.mxu0 0
        %481 = vmatprep.mubr.bf16.mxu0 0
        %482 = vmatmul.mubr.bf16.gmra.mrb[0].mxu0 %v377
        %v483 = vpop.f32.mrb[0].mxu0
        %v484 = vadd.f32 %v399, %v483
        %v485 = vpop.f32.mrb[0].mxu0
        %v486 = vpop.f32.mrb[0].mxu0
        %v487 = vpop.f32.mrb[0].mxu0
        %488 = vdwg.mxu0
        %v489 = vmax.f32 %v484, 0.0
        %v490 = vpack.c.bf16 %v489, %v489
        %v491 = vld [vmem:[%s5] sm:$0xf]
        %v492 = vld [vmem:[%s5 + $0x4] sm:$0xf]
        %v493 = vld [vmem:[%s5 + $0x8] sm:$0xf]
        %v494 = vld [vmem:[%s5 + $0xc] sm:$0xf]
        %v495 = vld [vmem:[%s5 + $0x10] sm:$0xf]
        %v496 = vld [vmem:[%s5 + $0x14] sm:$0xf]
        %v497 = vld [vmem:[%s5 + $0x18] sm:$0xf]
        %v498 = vld [vmem:[%s5 + $0x1c] sm:$0xf]
        %v499 = vld [vmem:[%s5 + $0x20] sm:$0xf]
        %v500 = vld [vmem:[%s5 + $0x24] sm:$0xf]
        %v501 = vld [vmem:[%s5 + $0x28] sm:$0xf]
        %v502 = vld [vmem:[%s5 + $0x2c] sm:$0xf]
        %v503 = vld [vmem:[%s5 + $0x30] sm:$0xf]
        %v504 = vld [vmem:[%s5 + $0x34] sm:$0xf]
        %v505 = vld [vmem:[%s5 + $0x38] sm:$0xf]
        %v506 = vld [vmem:[%s5 + $0x3c] sm:$0xf]
        %v507 = vld [vmem:[%s6] sm:$0x1]
        %v509 = vlaneseq
        %v510 = vshrl.u32 %v509, 7
        %v511 = vsub.s32 0, %v510
        %v512 = vrot.slane %v507, %v511
        %v530 = vunpack.c.l.b16 %v491
        %v531 = vunpack.c.l.b16 %v492
        %v532 = vunpack.c.l.b16 %v493
        %v533 = vunpack.c.l.b16 %v494
        %v534 = vunpack.c.l.b16 %v495
        %v535 = vunpack.c.l.b16 %v496
        %v536 = vunpack.c.l.b16 %v497
        %v537 = vunpack.c.l.b16 %v498
        %v538 = vunpack.c.l.b16 %v499
        %v539 = vunpack.c.l.b16 %v500
        %v540 = vunpack.c.l.b16 %v501
        %v541 = vunpack.c.l.b16 %v502
        %v542 = vunpack.c.l.b16 %v503
        %v543 = vunpack.c.l.b16 %v504
        %v544 = vunpack.c.l.b16 %v505
        %v545 = vunpack.c.l.b16 %v506
        %v546 = vpack.c.b16 %v531, %v530
        %v547 = vpack.c.b16 %v533, %v532
        %v548 = vpack.c.b16 %v535, %v534
        %v549 = vpack.c.b16 %v537, %v536
        %v550 = vpack.c.b16 %v539, %v538
        %v551 = vpack.c.b16 %v541, %v540
        %v552 = vpack.c.b16 %v543, %v542
        %v553 = vpack.c.b16 %v545, %v544
        %562 = vmatprep.subr.bf16.mxu0 0
        %563 = vmatpush1.bf16.msra.mxu0 %v546
        %564 = vmatprep.subr.bf16.mxu0 0
        %565 = vmatpush1.bf16.msra.mxu0 %v547
        %566 = vmatprep.subr.bf16.mxu0 0
        %567 = vmatpush1.bf16.msra.mxu0 %v548
        %568 = vmatprep.subr.bf16.mxu0 0
        %569 = vmatpush1.bf16.msra.mxu0 %v549
        %570 = vmatprep.subr.bf16.mxu0 0
        %571 = vmatpush1.bf16.msra.mxu0 %v550
        %572 = vmatprep.subr.bf16.mxu0 0
        %573 = vmatpush1.bf16.msra.mxu0 %v551
        %574 = vmatprep.subr.bf16.mxu0 0
        %575 = vmatpush1.bf16.msra.mxu0 %v552
        %576 = vmatprep.subr.bf16.mxu0 0
        %577 = vmatpush1.bf16.msra.mxu0 %v553
        %578 = vmatprep.subr.bf16.mxu0 0
        %579 = vmatpush1.bf16.msra.mxu0 0
        %580 = vmatprep.subr.bf16.mxu0 0
        %581 = vmatpush1.bf16.msra.mxu0 0
        %582 = vmatprep.subr.bf16.mxu0 0
        %583 = vmatpush1.bf16.msra.mxu0 0
        %584 = vmatprep.subr.bf16.mxu0 0
        %585 = vmatpush1.bf16.msra.mxu0 0
        %586 = vmatprep.subr.bf16.mxu0 0
        %587 = vmatpush1.bf16.msra.mxu0 0
        %588 = vmatprep.subr.bf16.mxu0 0
        %589 = vmatpush1.bf16.msra.mxu0 0
        %590 = vmatprep.subr.bf16.mxu0 0
        %591 = vmatpush1.bf16.msra.mxu0 0
        %592 = vmatprep.subr.bf16.mxu0 0
        %593 = vmatpush1.bf16.msra.mxu0 0
        %594 = vmatprep.mubr.bf16.mxu0 0
        %595 = vmatmul.mubr.bf16.gmra.mrb[0].mxu0 %v490
        %v596 = vpop.f32.mrb[0].mxu0
        %v597 = vadd.f32 %v512, %v596
        %v598 = vpop.f32.mrb[0].mxu0
        %v599 = vpop.f32.mrb[0].mxu0
        %v600 = vpop.f32.mrb[0].mxu0
        %601 = vdwg.mxu0
        %602 = vst.msk [vmem:[%s269] sm:$0xff] %vm328, %v597
        %s603 = sand.u32 %s181, 1
        %s604 = scalar_lea.sflag [#allocation3], %s603
        %s605 = sand.u32 %s181, 1
        %s606 = smul.addr %s605, 8
        %s607 = scalar_lea.vmem [#allocation2], %s606
        // Predicated region
        $region49: #{gaussian_refinement_mlp.1} parent=47 // pred_check
          %p608 = pneg %p191
        $region50: #{gaussian_refinement_mlp.1} parent=47 // pred_check_branch
          %610 = sbr.rel (%p608) target = $region52
        $region51: #{gaussian_refinement_mlp.1} parent=47 // pred_region
          %s612 = ssub.s32 128, 128
          %613 = vsyncadd %s604, %s612
          %s614 = smul.addr %s21, 128
          %s615 = scalar_lea.hbm %s7, %s614
          %s617 = sshll.u32 %s607, 4
          %s618 = int_to_ptr.vmem [resolvable:$true] %s617
          %620 = dma.vmem_to_hbm [thread:$0]  %s618, 128, %s615, %s604
        $region52: #{gaussian_refinement_mlp.1} parent=47 // pred_fallthru
          _
      $region48: #{gaussian_refinement_mlp.1} parent=5 // pred_fallthru
        _
      %p621 = scmp.le.s32.totalorder 2, %s16
      // Predicated region
      $region53: #{gaussian_refinement_mlp.1} parent=5 // pred_check
        %p622 = pneg %p621
      $region54: #{gaussian_refinement_mlp.1} parent=5 // pred_check_branch
        %624 = sbr.rel (%p622) target = $region56
      $region55: #{gaussian_refinement_mlp.1} parent=5 // pred_region
        %s625 = ssub.s32 %s16, 2
        // Predicated region
        $region57: #{gaussian_refinement_mlp.1} parent=55 // pred_check
          %p626 = pneg %p197
        $region58: #{gaussian_refinement_mlp.1} parent=55 // pred_check_branch
          %628 = sbr.rel (%p626) target = $region60
        $region59: #{gaussian_refinement_mlp.1} parent=55 // pred_region
          %s629 = sand.u32 %s182, 1
          %s630 = scalar_lea.sflag [#allocation3], %s629
          %s631 = sand.u32 %s182, 1
          %s632 = smul.addr %s631, 8
          %s633 = scalar_lea.vmem [#allocation2], %s632
          %634 = dma.done %s630, 128
        $region60: #{gaussian_refinement_mlp.1} parent=55 // pred_fallthru
          _
      $region56: #{gaussian_refinement_mlp.1} parent=5 // pred_fallthru
        _
    $region6: #{gaussian_refinement_mlp.1} parent=1 // loop_footer
      %s20 = sadd.s32 1, %s16
    $region7: #{gaussian_refinement_mlp.1} parent=1 // loop_footer_branch
      %15 = sbr.rel target = $region3
    $region8: #{gaussian_refinement_mlp.1} parent=1 // loop_exit
      _
    %635 = vsyncpa [#allocation3], 1
    %s636 = scalar_lea.sflag [#allocation3], 1
    %637 = vsyncpa %s636, 1

</llo_original>
